<compile_context>
chip_gen: v7x
topology: tpu7x:2x2x1
jax: 0.10.0
libtpu: 0.0.40
codegen_flags: <defaults>
</compile_context>

<pallas_src>
import jax
import jax.numpy as jnp
from jax.experimental import pallas as pl
from jax.experimental.pallas import tpu as pltpu


def _actnorm_kernel(x_ref, bias_ref, scale_ref, o_ref):
    # x_ref / o_ref: (C, T) tile — channels on sublanes, pixels on lanes.
    # bias_ref / scale_ref: (C, 1), VMEM-resident across all grid steps.
    o_ref[...] = ((x_ref[...] - bias_ref[...]) / scale_ref[...]).astype(o_ref.dtype)


def _pick_lane_tile(hw, c, itemsize, max_block_bytes=2 << 20):
    """Largest 128-multiple divisor of hw (<= VMEM budget per block)."""
    if hw % 128 != 0:
        return hw  # full spatial extent as one block (block dim == array dim)
    for t in (2048, 1024, 512, 256, 128):
        if hw % t == 0 and c * t * itemsize <= max_block_bytes:
            return t
    return 128


def actnorm_forward(x_nchw, scale, bias):
    """Actnorm forward (already-initialized path of the PyTorch module).

    x_nchw: (B, C, H, W) float32
    scale, bias: broadcastable to (1, C, 1, 1)
    returns (z, logdet) matching the PyTorch module.
    """
    B, C, H, W = x_nchw.shape
    HW = H * W

    # Free view: no data movement (contiguous reshape of NCHW).
    x3 = x_nchw.reshape(B, C, HW)
    scale_c = jnp.reshape(scale, (C, 1)).astype(x3.dtype)
    bias_c = jnp.reshape(bias, (C, 1)).astype(x3.dtype)

    itemsize = jnp.dtype(x3.dtype).itemsize
    T = _pick_lane_tile(HW, C, itemsize)
    grid = (B, HW // T)

    cost = pl.CostEstimate(
        flops=2 * B * C * HW,  # one sub + one div per element
        transcendentals=0,
        bytes_accessed=2 * B * C * HW * itemsize + 2 * C * itemsize,
    )

    z3 = pl.pallas_call(
        _actnorm_kernel,
        out_shape=jax.ShapeDtypeStruct((B, C, HW), x3.dtype),
        grid_spec=pltpu.PrefetchScalarGridSpec(
            num_scalar_prefetch=0,
            grid=grid,
            in_specs=[
                # batch dim squeezed out; (C, T) tile per grid step
                pl.BlockSpec((None, C, T), lambda b, t: (b, 0, t)),
                # constant-index params -> resident, no re-DMA per step
                pl.BlockSpec((C, 1), lambda b, t: (0, 0)),
                pl.BlockSpec((C, 1), lambda b, t: (0, 0)),
            ],
            out_specs=pl.BlockSpec((None, C, T), lambda b, t: (b, 0, t)),
        ),
        compiler_params=pltpu.CompilerParams(
            dimension_semantics=("parallel", "parallel"),
        ),
        cost_estimate=cost,
    )(x3, bias_c, scale_c)

    z = z3.reshape(B, C, H, W)

    # logdet of the tiny per-channel scale — scalar parameter math in plain JAX.
    logdet = -jnp.sum(jnp.log(jnp.abs(scale))) * H * W
    return z, logdet


def actnorm_init(x_nchw, eps=1e-6):
    """Data-dependent init (PyTorch path when `initialized == 0`).

    bias  = per-channel mean of x over (B, H, W)
    scale = per-channel population std (unbiased=False) + 1e-6
    One-time O(C) parameter statistics, kept in plain JAX.
    """
    C = x_nchw.shape[1]
    mean = jnp.mean(x_nchw, axis=(0, 2, 3))
    std = jnp.std(x_nchw, axis=(0, 2, 3))  # population std == torch .std(1, False)
    bias = mean.reshape(1, C, 1, 1)
    scale = (std + eps).reshape(1, C, 1, 1)
    return scale, bias


if __name__ == "__main__":
    key = jax.random.PRNGKey(0)
    B, C, H, W = 2, 4, 16, 16
    x = jax.random.normal(key, (B, C, H, W), dtype=jnp.float32)

    # Un-initialized path: data-dependent init, then the normalization kernel.
    # TODO(synk): the PyTorch buffer mutation (`initialized += 1`) is stateful;
    # here init is exposed functionally as a separate call.
    scale, bias = actnorm_init(x)

    fwd = jax.jit(actnorm_forward)
    z, logdet = fwd(x, scale, bias)
    jax.block_until_ready((z, logdet))

    # Cross-check against plain-JAX reference.
    z_ref = (x - bias) / scale
    logdet_ref = -jnp.sum(jnp.log(jnp.abs(scale))) * H * W
    assert z.shape == (B, C, H, W)
    assert jnp.allclose(z, z_ref, atol=1e-5, rtol=1e-5)
    assert jnp.allclose(logdet, logdet_ref, atol=1e-5, rtol=1e-5)

    # Initialized path with arbitrary parameters.
    scale2 = jax.random.uniform(jax.random.PRNGKey(1), (1, C, 1, 1),
                                minval=0.5, maxval=1.5, dtype=jnp.float32)
    bias2 = jax.random.normal(jax.random.PRNGKey(2), (1, C, 1, 1), dtype=jnp.float32)
    z2, logdet2 = fwd(x, scale2, bias2)
    jax.block_until_ready((z2, logdet2))
    assert jnp.allclose(z2, (x - bias2) / scale2, atol=1e-5, rtol=1e-5)
    assert jnp.allclose(logdet2, -jnp.sum(jnp.log(jnp.abs(scale2))) * H * W,
                        atol=1e-5, rtol=1e-5)

    print("KERNEL_OK")
</pallas_src>

<mosaic_0001>
module attributes {stable_mosaic.version = 11 : i64} {
  func.func @_actnorm_kernel(%arg0: i32, %arg1: i32, %arg2: memref<1x4x256xf32, #tpu.memory_space<vmem>>, %arg3: memref<4x1xf32, #tpu.memory_space<vmem>>, %arg4: memref<4x1xf32, #tpu.memory_space<vmem>>, %arg5: memref<1x4x256xf32, #tpu.memory_space<vmem>>) attributes {dimension_semantics = [#tpu.dimension_semantics<parallel>, #tpu.dimension_semantics<parallel>], iteration_bounds = array<i64: 2, 1>, scalar_prefetch = 0 : i64, scratch_operands = 0 : i64, tpu.core_type = #tpu.core_type<tc>, window_params = [{transform_indices = @transform_0, window_bounds = array<i64: 1, 4, 256>}, {pipeline_mode = #tpu.pipeline_mode<synchronous>, transform_indices = @transform_1, window_bounds = array<i64: 4, 1>}, {pipeline_mode = #tpu.pipeline_mode<synchronous>, transform_indices = @transform_2, window_bounds = array<i64: 4, 1>}, {transform_indices = @transform_3, window_bounds = array<i64: 1, 4, 256>}]} {
    %c0 = arith.constant 0 : index
    %c0_0 = arith.constant 0 : index
    %c0_1 = arith.constant 0 : index
    %0 = vector.load %arg2[%c0, %c0_0, %c0_1] : memref<1x4x256xf32, #tpu.memory_space<vmem>>, vector<1x4x256xf32>
    %1 = vector.shape_cast %0 : vector<1x4x256xf32> to vector<4x256xf32>
    %c0_2 = arith.constant 0 : index
    %c0_3 = arith.constant 0 : index
    %2 = vector.load %arg3[%c0_2, %c0_3] : memref<4x1xf32, #tpu.memory_space<vmem>>, vector<4x1xf32>
    %3 = vector.broadcast %2 : vector<4x1xf32> to vector<4x256xf32>
    %4 = arith.subf %1, %3 : vector<4x256xf32>
    %c0_4 = arith.constant 0 : index
    %c0_5 = arith.constant 0 : index
    %5 = vector.load %arg4[%c0_4, %c0_5] : memref<4x1xf32, #tpu.memory_space<vmem>>, vector<4x1xf32>
    %6 = vector.broadcast %5 : vector<4x1xf32> to vector<4x256xf32>
    %7 = arith.divf %4, %6 : vector<4x256xf32>
    %c0_6 = arith.constant 0 : index
    %c0_7 = arith.constant 0 : index
    %c0_8 = arith.constant 0 : index
    %8 = vector.load %arg5[%c0_6, %c0_7, %c0_8] : memref<1x4x256xf32, #tpu.memory_space<vmem>>, vector<1x4x256xf32>
    %9 = vector.shape_cast %8 : vector<1x4x256xf32> to vector<4x256xf32>
    %10 = vector.shape_cast %7 : vector<4x256xf32> to vector<1x4x256xf32>
    tpu.vector_store %arg5[%c0_6, %c0_7, %c0_8], %10 {strides = array<i32>} : memref<1x4x256xf32, #tpu.memory_space<vmem>>, vector<1x4x256xf32>,
    return
  }
  func.func @transform_0(%arg0: i32, %arg1: i32) -> (i32, i32, i32) {
    %c0_i32 = arith.constant 0 : i32
    %c0_i32_0 = arith.constant 0 : i32
    return %arg0, %c0_i32, %arg1 : i32, i32, i32
  }
  func.func @transform_1(%arg0: i32, %arg1: i32) -> (i32, i32) {
    %c0_i32 = arith.constant 0 : i32
    %c0_i32_0 = arith.constant 0 : i32
    %c0_i32_1 = arith.constant 0 : i32
    return %c0_i32, %c0_i32_0 : i32, i32
  }
  func.func @transform_2(%arg0: i32, %arg1: i32) -> (i32, i32) {
    %c0_i32 = arith.constant 0 : i32
    %c0_i32_0 = arith.constant 0 : i32
    %c0_i32_1 = arith.constant 0 : i32
    return %c0_i32, %c0_i32_0 : i32, i32
  }
  func.func @transform_3(%arg0: i32, %arg1: i32) -> (i32, i32, i32) {
    %c0_i32 = arith.constant 0 : i32
    %c0_i32_0 = arith.constant 0 : i32
    return %arg0, %c0_i32, %arg1 : i32, i32, i32
  }
}

</mosaic_0001>

<llo_original>
// kernel: actnorm_forward.1
$region0: #{actnorm_forward.1}
  #allocation0 [shape = 'u32[]', space=smem, size = 0x4, offset = 0x4, fixed_abs, tag = 'smem constant byte address 0x4 - core index']
  #allocation1 [shape = 'u32[144,128]{1,0:T(1,128)}', space=vmem, size = 0x12000, scoped, tag = 'internal scratch']
  %s0 = inlined_call_operand.vmem [shape: f32[2,4,256], index: 0, kind: input, shape index: {}]
  %s1 = inlined_call_operand.vmem [shape: f32[4,1], index: 1, kind: input, shape index: {}]
  %s2 = inlined_call_operand.vmem [shape: f32[4,1], index: 2, kind: input, shape index: {}]
  %s3 = inlined_call_operand.vmem [shape: f32[2,4,256], index: 3, kind: output, shape index: {}]
  %s4 = sld [smem:[#allocation0]]
  $region45: #{actnorm_forward.1} parent=0
    _
  %s6 = ssub.s32 1, %s4
  %s7 = scalar_select 0, %s6, %s4
  loop: start=0, step=1, limit=4
  $region2: #{actnorm_forward.1} parent=0 // loop_pre_header
    _
  $region3: #{actnorm_forward.1} parent=0 // loop_header
    %s9 = sphi 0, %s13
    %p10 = scmp.ge.s32.totalorder %s9, 4
    %s16 = sphi 0, %s28
    %s17 = sphi 0, %s24
    %s18 = sphi 0, %s16
    %s19 = sphi 0, %s17
    %s20 = sphi 0, %s18
    %s21 = sphi 0, %s19
    %s33 = sphi 0, %s35
    %s36 = sphi 0, %s33
    %s37 = sphi 0, %s36
    %s53 = sphi 0, %s37
    %s57 = sphi 0, %s57
    %s59 = sphi 0, %s57
    %s60 = sphi 0, %s59
    %s74 = sphi 0, %s60
    %s78 = sphi 0, %s78
    %s80 = sphi 0, %s78
    %s81 = sphi 0, %s80
    %s95 = sphi 0, %s81
    %s103 = sphi 0, %s105
    %s106 = sphi 0, %s103
    %s107 = sphi 0, %s106
    %s123 = sphi 0, %s107
  $region4: #{actnorm_forward.1} parent=0 // loop_header_branch
    %12 = sbr.rel (%p10) target = $region8
  $region5: #{actnorm_forward.1} parent=0 // loop_body
    %s14 = ssub.s32 %s9, 1
    %s15 = ssub.s32 %s9, 2
    %s22 = sadd.s32 1, %s17
    %p23 = scmp.ge.s32.totalorder %s22, 1
    %s24 = scalar_select %p23, 0, %s22
    %s25 = sadd.s32 1, %s16
    %s26 = scalar_select %p23, %s25, %s16
    %p27 = scmp.ge.s32.totalorder %s26, 2
    %s28 = scalar_select %p27, 0, %s26
    %s29 = ssub.s32 %s16, %s28
    %s30 = ssub.s32 %s17, %s24
    %s31 = sor.u32 %s29, %s30
    %p32 = scmp.eq.s32.totalorder %s31, 0
    %s34 = sadd.s32 %s33, 1
    %s35 = scalar_select %p32, %s33, %s34
    %p38 = pneg %p32
    %p39 = scmp.eq.s32.totalorder %s9, 1
    %p40 = por %p38, %p39
    %p41 = scmp.ne.s32.totalorder %s33, %s36
    %p42 = scmp.eq.s32.totalorder %s9, 0
    %p43 = por %p41, %p42
    %p44 = scmp.ne.s32.totalorder %s33, %s36
    %p45 = scmp.eq.s32.totalorder %s14, 1
    %p46 = por %p44, %p45
    %p47 = scmp.ne.s32.totalorder %s36, %s37
    %p48 = scmp.eq.s32.totalorder %s14, 0
    %p49 = por %p47, %p48
    %p50 = scmp.ne.s32.totalorder %s36, %s37
    %p51 = scmp.eq.s32.totalorder %s15, 1
    %p52 = por %p50, %p51
    %p54 = scmp.ne.s32.totalorder %s37, %s53
    %p55 = scmp.eq.s32.totalorder %s15, 0
    %p56 = por %p54, %p55
    %s58 = sadd.s32 %s57, 1
    %p61 = scmp.eq.s32.totalorder %s9, 1
    %p62 = scmp.ne.s32.totalorder %s57, %s59
    %p63 = scmp.eq.s32.totalorder %s9, 0
    %p64 = por %p62, %p63
    %p65 = scmp.ne.s32.totalorder %s57, %s59
    %p66 = scmp.eq.s32.totalorder %s14, 1
    %p67 = por %p65, %p66
    %p68 = scmp.ne.s32.totalorder %s59, %s60
    %p69 = scmp.eq.s32.totalorder %s14, 0
    %p70 = por %p68, %p69
    %p71 = scmp.ne.s32.totalorder %s59, %s60
    %p72 = scmp.eq.s32.totalorder %s15, 1
    %p73 = por %p71, %p72
    %p75 = scmp.ne.s32.totalorder %s60, %s74
    %p76 = scmp.eq.s32.totalorder %s15, 0
    %p77 = por %p75, %p76
    %s79 = sadd.s32 %s78, 1
    %p82 = scmp.eq.s32.totalorder %s9, 1
    %p83 = scmp.ne.s32.totalorder %s78, %s80
    %p84 = scmp.eq.s32.totalorder %s9, 0
    %p85 = por %p83, %p84
    %p86 = scmp.ne.s32.totalorder %s78, %s80
    %p87 = scmp.eq.s32.totalorder %s14, 1
    %p88 = por %p86, %p87
    %p89 = scmp.ne.s32.totalorder %s80, %s81
    %p90 = scmp.eq.s32.totalorder %s14, 0
    %p91 = por %p89, %p90
    %p92 = scmp.ne.s32.totalorder %s80, %s81
    %p93 = scmp.eq.s32.totalorder %s15, 1
    %p94 = por %p92, %p93
    %p96 = scmp.ne.s32.totalorder %s81, %s95
    %p97 = scmp.eq.s32.totalorder %s15, 0
    %p98 = por %p96, %p97
    %s99 = ssub.s32 %s16, %s28
    %s100 = ssub.s32 %s17, %s24
    %s101 = sor.u32 %s99, %s100
    %p102 = scmp.eq.s32.totalorder %s101, 0
    %s104 = sadd.s32 %s103, 1
    %s105 = scalar_select %p102, %s103, %s104
    %p108 = pneg %p102
    %p109 = scmp.eq.s32.totalorder %s9, 1
    %p110 = por %p108, %p109
    %p111 = scmp.ne.s32.totalorder %s103, %s106
    %p112 = scmp.eq.s32.totalorder %s9, 0
    %p113 = por %p111, %p112
    %p114 = scmp.ne.s32.totalorder %s103, %s106
    %p115 = scmp.eq.s32.totalorder %s14, 1
    %p116 = por %p114, %p115
    %p117 = scmp.ne.s32.totalorder %s106, %s107
    %p118 = scmp.eq.s32.totalorder %s14, 0
    %p119 = por %p117, %p118
    %p120 = scmp.ne.s32.totalorder %s106, %s107
    %p121 = scmp.eq.s32.totalorder %s15, 1
    %p122 = por %p120, %p121
    %p124 = scmp.ne.s32.totalorder %s107, %s123
    %p125 = scmp.eq.s32.totalorder %s15, 0
    %p126 = por %p124, %p125
    %p127 = scmp.le.s32.totalorder 1, %s9
    %p128 = scmp.lt.s32.totalorder %s9, 3
    %p129 = pnand %p127, %p128
    %p130 = pneg %p129
    // Predicated region
    $region9: #{actnorm_forward.1} parent=5 // pred_check
      _
    $region10: #{actnorm_forward.1} parent=5 // pred_check_branch
      %132 = sbr.rel (%p129) target = $region12
    $region11: #{actnorm_forward.1} parent=5 // pred_region
      %s133 = ssub.s32 %s9, 1
      // Predicated region
      $region13: #{actnorm_forward.1} parent=11 // pred_check
        %p134 = pneg %p70
      $region14: #{actnorm_forward.1} parent=11 // pred_check_branch
        %136 = sbr.rel (%p134) target = $region16
      $region15: #{actnorm_forward.1} parent=11 // pred_region
        _
      $region16: #{actnorm_forward.1} parent=11 // pred_fallthru
        _
      // Predicated region
      $region17: #{actnorm_forward.1} parent=11 // pred_check
        %p137 = pneg %p91
      $region18: #{actnorm_forward.1} parent=11 // pred_check_branch
        %139 = sbr.rel (%p137) target = $region20
      $region19: #{actnorm_forward.1} parent=11 // pred_region
        _
      $region20: #{actnorm_forward.1} parent=11 // pred_fallthru
        _
    $region12: #{actnorm_forward.1} parent=5 // pred_fallthru
      _
    %p140 = scmp.lt.s32.totalorder %s9, 2
    // Predicated region
    $region21: #{actnorm_forward.1} parent=5 // pred_check
      %p141 = pneg %p140
    $region22: #{actnorm_forward.1} parent=5 // pred_check_branch
      %143 = sbr.rel (%p141) target = $region24
    $region23: #{actnorm_forward.1} parent=5 // pred_region
      // Predicated region
      $region25: #{actnorm_forward.1} parent=23 // pred_check
        %p144 = pneg %p43
      $region26: #{actnorm_forward.1} parent=23 // pred_check_branch
        %146 = sbr.rel (%p144) target = $region28
      $region27: #{actnorm_forward.1} parent=23 // pred_region
        %s147 = smul.u32 2, %s17
        %p148 = scmp.lt.s32.totalorder %s16, 1
        %s149 = scalar_select %p148, %s16, 1
        %p150 = scmp.lt.s32.totalorder %s147, 1
        %s151 = scalar_select %p150, %s147, 1
        %s152 = smul.addr %s149, 2
        %s153 = sadd.s32 %s151, %s152
        %s154 = smul.addr %s153, 4
        %s155 = scalar_lea.vmem %s0, %s154
        %s156 = smul.u32 2, %s17
      $region28: #{actnorm_forward.1} parent=23 // pred_fallthru
        _
    $region24: #{actnorm_forward.1} parent=5 // pred_fallthru
      _
    %p157 = scmp.le.s32.totalorder 1, %s9
    %p158 = scmp.lt.s32.totalorder %s9, 3
    %p159 = pnand %p157, %p158
    %p160 = pneg %p159
    // Predicated region
    $region29: #{actnorm_forward.1} parent=5 // pred_check
      _
    $region30: #{actnorm_forward.1} parent=5 // pred_check_branch
      %162 = sbr.rel (%p159) target = $region32
    $region31: #{actnorm_forward.1} parent=5 // pred_region
      %s163 = ssub.s32 %s9, 1
      %s164 = smul.u32 2, %s19
      %p165 = scmp.lt.s32.totalorder %s18, 1
      %s166 = scalar_select %p165, %s18, 1
      %p167 = scmp.lt.s32.totalorder %s164, 1
      %s168 = scalar_select %p167, %s164, 1
      %s169 = smul.addr %s166, 2
      %s170 = sadd.s32 %s168, %s169
      %s171 = smul.addr %s170, 4
      %s172 = scalar_lea.vmem %s0, %s171
      %p173 = pneg %p49
      %p174 = pneg %p46
      %p175 = pneg %p70
      %p176 = pneg %p67
      %p177 = pneg %p91
      %p178 = pneg %p88
      %p179 = pneg %p119
      %p180 = pneg %p116
      %s181 = smul.u32 2, %s19
      %p182 = scmp.lt.s32.totalorder %s18, 1
      %s183 = scalar_select %p182, %s18, 1
      %p184 = scmp.lt.s32.totalorder %s181, 1
      %s185 = scalar_select %p184, %s181, 1
      %s186 = smul.addr %s183, 2
      %s187 = sadd.s32 %s185, %s186
      %s188 = smul.addr %s187, 4
      %s189 = scalar_lea.vmem %s3, %s188
      %s190 = smul.u32 2, %s19
      %p191 = scmp.lt.s32.totalorder %s18, 1
      %s192 = scalar_select %p191, %s18, 1
      %p193 = scmp.lt.s32.totalorder %s190, 1
      %s194 = scalar_select %p193, %s190, 1
      %s195 = smul.addr %s192, 2
      %s196 = sadd.s32 %s194, %s195
      %s197 = smul.addr %s196, 4
      %s198 = scalar_lea.vmem %s0, %s197
      %s199 = smul.u32 2, %s19
      %s200 = smul.u32 2, %s19
      %p201 = scmp.lt.s32.totalorder %s18, 1
      %s202 = scalar_select %p201, %s18, 1
      %p203 = scmp.lt.s32.totalorder %s200, 1
      %s204 = scalar_select %p203, %s200, 1
      %s205 = smul.addr %s202, 2
      %s206 = sadd.s32 %s204, %s205
      %s207 = smul.addr %s206, 4
      %s208 = scalar_lea.vmem %s3, %s207
      %s209 = smul.u32 2, %s19
      %v210 = vld [vmem:[%s198] sm:$0xff]
      %v211 = vld [vmem:[%s1] sm:$0xf]
      %213 = vset.pattern.permute.xlu0 0
      %214 = vperm.xlu0 %213, %v211
      %v215 = vpop.permute.xlu0 %214
      %v217 = vunpack.c.l.s4 839922192
      %v218 = vunpack.c.0.s8 %v217
      %v219 = vlaneseq
      %v220 = vshrl.u32 %v219, 7
      %v221 = vsub.s32 %v218, %v220
      %v222 = vrot.slane %v215, %v221
      %v224 = vsub.f32 %v210, %v222
      %v225 = vld [vmem:[%s2] sm:$0xf]
      %227 = vset.pattern.permute.xlu0 0
      %228 = vperm.xlu0 %227, %v225
      %v229 = vpop.permute.xlu0 %228
      %v231 = vunpack.c.l.s4 839922192
      %v232 = vunpack.c.0.s8 %v231
      %v233 = vlaneseq
      %v234 = vshrl.u32 %v233, 7
      %v235 = vsub.s32 %v232, %v234
      %v236 = vrot.slane %v229, %v235
      %v238 = vrcp.pop %v236
      %v239 = vmul.f32 %v224, %v238
      %240 = vst [vmem:[%s208] sm:$0xff] %v239
      %s241 = smul.u32 2, %s19
      %p242 = scmp.lt.s32.totalorder %s18, 1
      %s243 = scalar_select %p242, %s18, 1
      %p244 = scmp.lt.s32.totalorder %s241, 1
      %s245 = scalar_select %p244, %s241, 1
      %s246 = smul.addr %s243, 2
      %s247 = sadd.s32 %s245, %s246
      %s248 = smul.addr %s247, 4
      %s249 = scalar_lea.vmem %s3, %s248
      // Predicated region
      $region33: #{actnorm_forward.1} parent=31 // pred_check
        %p250 = pneg %p116
      $region34: #{actnorm_forward.1} parent=31 // pred_check_branch
        %252 = sbr.rel (%p250) target = $region36
      $region35: #{actnorm_forward.1} parent=31 // pred_region
        %s253 = smul.u32 2, %s19
      $region36: #{actnorm_forward.1} parent=31 // pred_fallthru
        _
    $region32: #{actnorm_forward.1} parent=5 // pred_fallthru
      _
    %p254 = scmp.le.s32.totalorder 2, %s9
    // Predicated region
    $region37: #{actnorm_forward.1} parent=5 // pred_check
      %p255 = pneg %p254
    $region38: #{actnorm_forward.1} parent=5 // pred_check_branch
      %257 = sbr.rel (%p255) target = $region40
    $region39: #{actnorm_forward.1} parent=5 // pred_region
      %s258 = ssub.s32 %s9, 2
      // Predicated region
      $region41: #{actnorm_forward.1} parent=39 // pred_check
        %p259 = pneg %p122
      $region42: #{actnorm_forward.1} parent=39 // pred_check_branch
        %261 = sbr.rel (%p259) target = $region44
      $region43: #{actnorm_forward.1} parent=39 // pred_region
        %s262 = smul.u32 2, %s21
        %p263 = scmp.lt.s32.totalorder %s20, 1
        %s264 = scalar_select %p263, %s20, 1
        %p265 = scmp.lt.s32.totalorder %s262, 1
        %s266 = scalar_select %p265, %s262, 1
        %s267 = smul.addr %s264, 2
        %s268 = sadd.s32 %s266, %s267
        %s269 = smul.addr %s268, 4
        %s270 = scalar_lea.vmem %s3, %s269
      $region44: #{actnorm_forward.1} parent=39 // pred_fallthru
        _
    $region40: #{actnorm_forward.1} parent=5 // pred_fallthru
      _
  $region6: #{actnorm_forward.1} parent=0 // loop_footer
    %s13 = sadd.s32 1, %s9
  $region7: #{actnorm_forward.1} parent=0 // loop_footer_branch
    %8 = sbr.rel target = $region3
  $region8: #{actnorm_forward.1} parent=0 // loop_exit
    _

</llo_original>
